<compile_context>
chip_gen: v5e
topology: v5e:2x2
jax: 0.10.0
libtpu: 0.0.40
codegen_flags: <defaults>
</compile_context>

<pallas_src>
import functools

import jax
import jax.numpy as jnp
from jax.experimental import pallas as pl
from jax.experimental.pallas import tpu as pltpu


def _round_up(v: int, m: int) -> int:
    return ((v + m - 1) // m) * m


def _round_down(v: int, m: int) -> int:
    return (v // m) * m


def _gap1d_kernel(x_ref, o_ref, *scratch, inv_s, s_tail):
    """Grid = (B_blocks, C_blocks, S_blocks); S is the innermost reduction axis.

    x_ref:   (TB, TS, TC) input tile in VMEM
    o_ref:   (TB, TC)     output tile (resident across the S axis)
    scratch: optional (TB, TC) float32 accumulator (only for non-f32 outputs;
             f32 outputs accumulate directly into o_ref)
    s_tail:  number of valid sequence rows in the final S tile (0 => full tile)
    """
    acc_ref = scratch[0] if scratch else o_ref
    s = pl.program_id(2)
    last = pl.num_programs(2) - 1

    @pl.when(s == 0)
    def _init():
        acc_ref[...] = jnp.zeros_like(acc_ref)

    if s_tail == 0:
        # S divides evenly into tiles: single clean steady-state path.
        acc_ref[...] += jnp.sum(x_ref[...].astype(jnp.float32), axis=1)
    else:
        @pl.when(s < last)
        def _steady():
            acc_ref[...] += jnp.sum(x_ref[...].astype(jnp.float32), axis=1)

        @pl.when(s == last)
        def _tail():
            # Static slice of the ref: only the valid rows of the ragged final
            # tile are read; the out-of-bounds remainder is never touched.
            acc_ref[...] += jnp.sum(
                x_ref[:, :s_tail, :].astype(jnp.float32), axis=1)

    @pl.when(s == last)
    def _finalize():
        o_ref[...] = (acc_ref[...] * inv_s).astype(o_ref.dtype)


def global_average_pooling_1d(x, *, block_budget_bytes=2 * 1024 * 1024):
    """x: (B, S, C) -> (B, C), mean over axis=1 (channels_last)."""
    B, S, C = x.shape
    itemsize = jnp.dtype(x.dtype).itemsize
    out_dtype = x.dtype
    out_itemsize = jnp.dtype(out_dtype).itemsize

    # ---- Tile sizes (no host-side padding anywhere) ------------------------
    # Batch tile: full B when small (full-dim block is always legal), else 8
    # (sublane multiple for the output block); ragged last B block is handled
    # by Pallas' masked writeback.
    tb = B if B <= 8 else 8

    # Channel tile: full contiguous C when it fits the block budget at ts=8,
    # otherwise the largest multiple of 128 that does (ragged last C block ->
    # out-of-bounds output columns, masked on writeback).
    tc = C
    if tb * 8 * tc * itemsize > block_budget_bytes and C > 128:
        tc = max(128, _round_down(block_budget_bytes // (tb * 8 * itemsize), 128))

    # v7x has 2 TensorCores sharing the parallel grid axes: make sure there are
    # at least 2 (b, c) blocks when C is wide enough to split legally.
    if pl.cdiv(B, tb) * pl.cdiv(C, tc) == 1 and C >= 256:
        tc = _round_up(pl.cdiv(C, 2), 128)

    # Sequence (reduction) tile: whole S if it fits the budget, else the
    # largest multiple of 8 that does. A ragged final S tile is masked
    # in-kernel (it MUST be: without padding the out-of-bounds rows are junk).
    if tb * S * tc * itemsize <= block_budget_bytes:
        ts = S
    else:
        ts = max(8, _round_down(block_budget_bytes // (tb * tc * itemsize), 8))
    s_tail = S % ts

    grid = (pl.cdiv(B, tb), pl.cdiv(C, tc), pl.cdiv(S, ts))

    # f32 outputs accumulate directly into the resident output block.
    use_scratch = jnp.dtype(out_dtype) != jnp.dtype(jnp.float32)
    scratch_shapes = [pltpu.VMEM((tb, tc), jnp.float32)] if use_scratch else []

    # Tight VMEM request: double-buffered input + output + accumulator, plus
    # headroom for a possible f32 upcast temp of the input block, plus ~25%.
    vmem_needed = (2 * tb * ts * tc * itemsize
                   + 2 * tb * tc * out_itemsize
                   + (tb * tc * 4 if use_scratch else 0))
    if itemsize < 4:
        vmem_needed += tb * ts * tc * 4
    vmem_limit = int(min(32 * 1024 * 1024,
                         max(vmem_needed + vmem_needed // 4, 4 * 1024 * 1024)))

    kernel = functools.partial(_gap1d_kernel, inv_s=1.0 / S, s_tail=s_tail)

    return pl.pallas_call(
        kernel,
        out_shape=jax.ShapeDtypeStruct((B, C), out_dtype),
        grid=grid,
        in_specs=[pl.BlockSpec((tb, ts, tc), lambda b, c, s: (b, s, c))],
        out_specs=pl.BlockSpec((tb, tc), lambda b, c, s: (b, c)),
        scratch_shapes=scratch_shapes,
        compiler_params=pltpu.CompilerParams(
            dimension_semantics=("parallel", "parallel", "arbitrary"),
            vmem_limit_bytes=vmem_limit,
        ),
        cost_estimate=pl.CostEstimate(
            flops=B * S * C + B * C,
            transcendentals=0,
            bytes_accessed=B * S * C * itemsize + B * C * out_itemsize,
        ),
    )(x)


if __name__ == "__main__":
    key = jax.random.PRNGKey(0)

    # Small shape consistent with the module: batch=2, seq=8, channels=32.
    B, S, C = 2, 8, 32
    x = jax.random.normal(key, (B, S, C), dtype=jnp.float32)
    out = jax.block_until_ready(global_average_pooling_1d(x))
    ref = jnp.mean(x, axis=1)
    assert out.shape == (B, C), out.shape
    assert jnp.allclose(out, ref, atol=1e-5, rtol=1e-5), "mismatch vs reference"

    # Non-(8,128)-aligned shape: full-dim blocks, no padding anywhere.
    x2 = jax.random.normal(jax.random.PRNGKey(1), (3, 10, 160), dtype=jnp.float32)
    out2 = jax.block_until_ready(global_average_pooling_1d(x2))
    ref2 = jnp.mean(x2, axis=1)
    assert out2.shape == (3, 160), out2.shape
    assert jnp.allclose(out2, ref2, atol=1e-5, rtol=1e-5), "mismatch (full-dim blocks)"

    # Force multi-block tiling with a ragged final S tile (masked in-kernel)
    # and a split C axis, via an artificially small block budget.
    x3 = jax.random.normal(jax.random.PRNGKey(2), (5, 21, 256), dtype=jnp.float32)
    out3 = jax.block_until_ready(
        global_average_pooling_1d(x3, block_budget_bytes=16 * 1024))
    ref3 = jnp.mean(x3, axis=1)
    assert out3.shape == (5, 256), out3.shape
    assert jnp.allclose(out3, ref3, atol=1e-5, rtol=1e-5), "mismatch (ragged S tiles)"

    # bf16 input: f32 scratch accumulation, bf16 output, split C for 2 cores.
    x4 = jax.random.normal(jax.random.PRNGKey(3), (4, 37, 256), dtype=jnp.bfloat16)
    out4 = jax.block_until_ready(global_average_pooling_1d(x4))
    ref4 = jnp.mean(x4.astype(jnp.float32), axis=1).astype(jnp.bfloat16)
    assert out4.shape == (4, 256), out4.shape
    assert jnp.allclose(out4.astype(jnp.float32), ref4.astype(jnp.float32),
                        atol=1e-2, rtol=1e-2), "mismatch (bf16)"

    print("KERNEL_OK")
</pallas_src>

<mosaic_0001>
module attributes {stable_mosaic.version = 11 : i64} {
  func.func @_gap1d_kernel(%arg0: i32, %arg1: i32, %arg2: i32, %arg3: memref<2x8x32xf32, #tpu.memory_space<vmem>>, %arg4: memref<2x32xf32, #tpu.memory_space<vmem>>) attributes {dimension_semantics = [#tpu.dimension_semantics<parallel>, #tpu.dimension_semantics<parallel>, #tpu.dimension_semantics<arbitrary>], iteration_bounds = array<i64: 1, 1, 1>, scalar_prefetch = 0 : i64, scratch_operands = 0 : i64, tpu.core_type = #tpu.core_type<tc>, window_params = [{transform_indices = @transform_0, window_bounds = array<i64: 2, 8, 32>}, {transform_indices = @transform_1, window_bounds = array<i64: 2, 32>}]} {
    %c0_i32 = arith.constant 0 : i32
    %0 = arith.cmpi eq, %arg2, %c0_i32 : i32
    %1 = arith.extui %0 : i1 to i32
    %c0_i32_0 = arith.constant 0 : i32
    %2 = arith.cmpi ne, %1, %c0_i32_0 : i32
    scf.if %2 {
      %cst_9 = arith.constant 0.000000e+00 : f32
      %11 = vector.broadcast %cst_9 : f32 to vector<2x32xf32>
      %c0_10 = arith.constant 0 : index
      %c0_11 = arith.constant 0 : index
      %12 = vector.load %arg4[%c0_10, %c0_11] : memref<2x32xf32, #tpu.memory_space<vmem>>, vector<2x32xf32>
      tpu.vector_store %arg4[%c0_10, %c0_11], %11 {strides = array<i32>} : memref<2x32xf32, #tpu.memory_space<vmem>>, vector<2x32xf32>,
    } else {
    }
    %c0 = arith.constant 0 : index
    %c0_1 = arith.constant 0 : index
    %3 = vector.load %arg4[%c0, %c0_1] : memref<2x32xf32, #tpu.memory_space<vmem>>, vector<2x32xf32>
    %c0_2 = arith.constant 0 : index
    %c0_3 = arith.constant 0 : index
    %c0_4 = arith.constant 0 : index
    %4 = vector.load %arg3[%c0_2, %c0_3, %c0_4] : memref<2x8x32xf32, #tpu.memory_space<vmem>>, vector<2x8x32xf32>
    %cst = arith.constant dense<0.000000e+00> : vector<2x32xf32>
    %5 = vector.multi_reduction <add>, %4, %cst [1] : vector<2x8x32xf32> to vector<2x32xf32>
    %6 = arith.addf %3, %5 : vector<2x32xf32>
    %c0_5 = arith.constant 0 : index
    %c0_6 = arith.constant 0 : index
    %7 = vector.load %arg4[%c0_5, %c0_6] : memref<2x32xf32, #tpu.memory_space<vmem>>, vector<2x32xf32>
    tpu.vector_store %arg4[%c0_5, %c0_6], %6 {strides = array<i32>} : memref<2x32xf32, #tpu.memory_space<vmem>>, vector<2x32xf32>,
    %c0_i32_7 = arith.constant 0 : i32
    %8 = arith.cmpi eq, %arg2, %c0_i32_7 : i32
    %9 = arith.extui %8 : i1 to i32
    %c0_i32_8 = arith.constant 0 : i32
    %10 = arith.cmpi ne, %9, %c0_i32_8 : i32
    scf.if %10 {
      %c0_9 = arith.constant 0 : index
      %c0_10 = arith.constant 0 : index
      %11 = vector.load %arg4[%c0_9, %c0_10] : memref<2x32xf32, #tpu.memory_space<vmem>>, vector<2x32xf32>
      %cst_11 = arith.constant 1.250000e-01 : f32
      %12 = vector.broadcast %cst_11 : f32 to vector<2x32xf32>
      %13 = arith.mulf %11, %12 : vector<2x32xf32>
      %c0_12 = arith.constant 0 : index
      %c0_13 = arith.constant 0 : index
      %14 = vector.load %arg4[%c0_12, %c0_13] : memref<2x32xf32, #tpu.memory_space<vmem>>, vector<2x32xf32>
      tpu.vector_store %arg4[%c0_12, %c0_13], %13 {strides = array<i32>} : memref<2x32xf32, #tpu.memory_space<vmem>>, vector<2x32xf32>,
    } else {
    }
    return
  }
  func.func @transform_0(%arg0: i32, %arg1: i32, %arg2: i32) -> (i32, i32, i32) {
    %c0_i32 = arith.constant 0 : i32
    return %arg0, %arg2, %arg1 : i32, i32, i32
  }
  func.func @transform_1(%arg0: i32, %arg1: i32, %arg2: i32) -> (i32, i32) {
    %c0_i32 = arith.constant 0 : i32
    return %arg0, %arg1 : i32, i32
  }
}

</mosaic_0001>

<llo_original>
// kernel: tpu_custom_call.1
$region0: #{tpu_custom_call.1}
  #allocation0 [shape = 'u32[]', space=smem, size = 0x4, offset = 0x4, fixed_abs, tag = 'smem constant byte address 0x4 - core index']
  #allocation1 [shape = 'u32[72,128]{1,0:T(1,128)}', space=vmem, size = 0x9000, scoped, tag = 'internal scratch']
  %s0 = inlined_call_operand.hbm [shape: f32[2,8,32], index: 0, kind: input, shape index: {}]
  %s1 = inlined_call_operand.hbm [shape: f32[2,32], index: 1, kind: output, shape index: {}]
  %s2 = sld [smem:[#allocation0]]
  $region26: #{tpu_custom_call.1} parent=0
    _
  %s4 = ssub.s32 1, %s2
  %s5 = scalar_select 0, %s4, %s2
  $region1: #{tpu_custom_call.1} parent=0
    #allocation2 [shape = 'u8[8192]{0}', space=vmem, size = 0x2000, scoped, tag = 'input window, operand 0, single buffered']
    #allocation3 [shape = 's32[1]{0}', space=sflag, size = 0x4, scoped, tag = 'scoped memory for tpu_custom_call.1']
    #allocation4 [shape = 's32[1]{0}', space=sflag, size = 0x4, scoped, tag = 'scoped memory for tpu_custom_call.1']
    #allocation5 [shape = 'u8[1024]{0}', space=vmem, size = 0x400, scoped, tag = 'output window, operand 0, single buffered']
    %6 = vsyncpa [#allocation3], 0
    %7 = vsyncpa [#allocation4], 0
    // Predicated region
    $region2: #{tpu_custom_call.1} parent=1 // pred_check
      _
    $region3: #{tpu_custom_call.1} parent=1 // pred_check_branch
      %9 = sbr.rel (0) target = $region5
    $region4: #{tpu_custom_call.1} parent=1 // pred_region
      %11 = vsyncadd [#allocation3], 0
      %s12 = sshll.u32 %s0, 4
      %s13 = int_to_ptr.hbm [resolvable:$true] %s12
      %s14 = sshll.u32 [#allocation2], 4
      %s15 = int_to_ptr.vmem [resolvable:$true] %s14
      %20 = dma.hbm_to_vmem [thread:$0]  %s13, 256, %s15, [#allocation3], 128, 128, 8
    $region5: #{tpu_custom_call.1} parent=1 // pred_fallthru
      _
    // Predicated region
    $region6: #{tpu_custom_call.1} parent=1 // pred_check
      _
    $region7: #{tpu_custom_call.1} parent=1 // pred_check_branch
      %22 = sbr.rel (0) target = $region9
    $region8: #{tpu_custom_call.1} parent=1 // pred_region
      %24 = dma.done [#allocation3], 256
    $region9: #{tpu_custom_call.1} parent=1 // pred_fallthru
      _
    %p25 = scmp.eq.s32.totalorder 0, 0
    // Predicated region
    $region10: #{tpu_custom_call.1} parent=1 // pred_check
      %p26 = pneg %p25
    $region11: #{tpu_custom_call.1} parent=1 // pred_check_branch
      %28 = sbr.rel (%p26) target = $region13
    $region12: #{tpu_custom_call.1} parent=1 // pred_region
      %vm29 = vcmask 254976
      %30 = vst.msk [vmem:[#allocation5] sm:$0x3] %vm29, 0.0
    $region13: #{tpu_custom_call.1} parent=1 // pred_fallthru
      _
    %v31 = vld [vmem:[#allocation5] sm:$0x3]
    %v32 = vld [vmem:[#allocation2] sm:$0xff]
    %v33 = vld [vmem:[#allocation2 + $0x8] sm:$0xff]
    %vm34 = vcmask 261120
    %v35 = vsel %vm34, %v32, 0.0
    %v36 = vrot.slane %v35, 4
    %v37 = vadd.f32 %v35, %v36
    %v38 = vrot.slane %v37, 2
    %v39 = vadd.f32 %v37, %v38
    %v40 = vrot.slane %v39, 1
    %v41 = vadd.f32 %v39, %v40
    %v42 = vsel %vm34, %v33, 0.0
    %v43 = vrot.slane %v42, 4
    %v44 = vadd.f32 %v42, %v43
    %v45 = vrot.slane %v44, 2
    %v46 = vadd.f32 %v44, %v45
    %v47 = vrot.slane %v46, 1
    %v48 = vadd.f32 %v46, %v47
    %vm51 = vcmask 1041409
    %v52 = vsel %vm51, %v48, %v41
    %v54 = vadd.f32 %v31, %v52
    %vm55 = vcmask 254976
    %56 = vst.msk [vmem:[#allocation5] sm:$0x3] %vm55, %v54
    // Predicated region
    $region14: #{tpu_custom_call.1} parent=1 // pred_check
      %p57 = pneg %p25
    $region15: #{tpu_custom_call.1} parent=1 // pred_check_branch
      %59 = sbr.rel (%p57) target = $region17
    $region16: #{tpu_custom_call.1} parent=1 // pred_region
      %v60 = vld [vmem:[#allocation5] sm:$0x3]
      %v61 = vmul.f32 %v60, 0.125
      %62 = vst.msk [vmem:[#allocation5] sm:$0x3] %vm55, %v61
    $region17: #{tpu_custom_call.1} parent=1 // pred_fallthru
      _
    // Predicated region
    $region18: #{tpu_custom_call.1} parent=1 // pred_check
      _
    $region19: #{tpu_custom_call.1} parent=1 // pred_check_branch
      %64 = sbr.rel (0) target = $region21
    $region20: #{tpu_custom_call.1} parent=1 // pred_region
      %66 = vsyncadd [#allocation4], 0
      %s68 = sshll.u32 [#allocation5], 4
      %s69 = int_to_ptr.vmem [resolvable:$true] %s68
      %s70 = sshll.u32 %s1, 4
      %s71 = int_to_ptr.hbm [resolvable:$true] %s70
      %73 = dma.vmem_to_hbm [thread:$0]  %s69, 32, %s71, [#allocation4]
    $region21: #{tpu_custom_call.1} parent=1 // pred_fallthru
      _
    // Predicated region
    $region22: #{tpu_custom_call.1} parent=1 // pred_check
      _
    $region23: #{tpu_custom_call.1} parent=1 // pred_check_branch
      %75 = sbr.rel (0) target = $region25
    $region24: #{tpu_custom_call.1} parent=1 // pred_region
      %77 = dma.done [#allocation4], 32
    $region25: #{tpu_custom_call.1} parent=1 // pred_fallthru
      _
    %78 = vsyncpa [#allocation3], 1
    %79 = vsyncpa [#allocation4], 1

</llo_original>
